<compile_context>
chip_gen: v6e
topology: v6e:2x2x1
jax: 0.10.0
libtpu: 0.0.40
codegen_flags: <defaults>
</compile_context>

<pallas_src>
import jax
import jax.numpy as jnp
from jax import lax
from jax.experimental import pallas as pl
from jax.experimental.pallas import tpu as pltpu


def _round_up(x, m):
    return (x + m - 1) // m * m


def _gemm_relu_kernel(p_ref, w_ref, o_ref):
    """Full-K path: one MXU GEMM + ReLU per (batch, M-tile, Cout-tile) block.

    p_ref: (1, TM, K_PAD) bf16   w_ref: (K_PAD, TN) bf16   o_ref: (1, TM, TN) bf16
    """
    acc = jnp.dot(p_ref[0], w_ref[...], preferred_element_type=jnp.float32)
    o_ref[0] = jnp.maximum(acc, 0.0).astype(o_ref.dtype)


def _gemm_relu_acc_kernel(p_ref, w_ref, o_ref, acc_ref):
    """K-split fallback: grid = (b, mi, ni, ki) with ki innermost (reduction)."""
    @pl.when(pl.program_id(3) == 0)
    def _():
        acc_ref[...] = jnp.zeros_like(acc_ref)

    acc_ref[...] += jnp.dot(p_ref[0], w_ref[...],
                            preferred_element_type=jnp.float32)

    @pl.when(pl.program_id(3) == pl.num_programs(3) - 1)
    def _():
        o_ref[0] = jnp.maximum(acc_ref[...], 0.0).astype(o_ref.dtype)


def basic_conv2d(x_nchw, weight, *, stride=1, padding=0,
                 tile_m=512, tile_n_max=512, vmem_budget=32 * 1024 * 1024):
    """Conv2d(bias=False) + ReLU with PyTorch NCHW / OIHW semantics."""
    n, cin, h, w = x_nchw.shape
    cout, cin_w, kh, kw = weight.shape
    assert cin == cin_w
    out_dtype = x_nchw.dtype

    h_out = (h + 2 * padding - kh) // stride + 1
    w_out = (w + 2 * padding - kw) // stride + 1
    m = h_out * w_out
    k = kh * kw * cin

    # ---------------- wrapper-side layout plumbing (plain JAX) ----------------
    # bf16 BEFORE any data expansion: pad / slices / concat all happen in bf16.
    x_nhwc = jnp.transpose(x_nchw, (0, 2, 3, 1)).astype(jnp.bfloat16)   # N,H,W,C
    x_pad = jnp.pad(x_nhwc, ((0, 0), (padding, padding),
                             (padding, padding), (0, 0)))

    # im2col: tap ordering (kh, kw, cin) along the last axis.
    taps = []
    for i in range(kh):
        for j in range(kw):
            taps.append(lax.slice(
                x_pad,
                (0, i, j, 0),
                (n, i + (h_out - 1) * stride + 1,
                 j + (w_out - 1) * stride + 1, cin),
                (1, stride, stride, 1)))                      # (N,Hout,Wout,Cin)
    patches = jnp.concatenate(taps, axis=-1).reshape(n, m, k)  # bf16 (N, M, K)

    # Weights (Cout,Cin,KH,KW) -> (KH,KW,Cin,Cout) -> (K,Cout), same tap order.
    w2d = jnp.transpose(weight, (2, 3, 1, 0)).reshape(k, cout).astype(jnp.bfloat16)

    # ------------------------------ tiling plan -------------------------------
    k_pad = _round_up(k, 128)                      # minimal K pad, no waste

    # 256-alignment of Cout for wide layers (fills a 2x256 MXU pass on v6e/v7x).
    n_align = 128 if cout <= 128 else 256
    cout_pad = _round_up(cout, n_align)
    if cout_pad <= tile_n_max:
        tile_n = cout_pad
    else:
        tile_n = next(c for c in (512, 384, 256, 128)
                      if c <= tile_n_max and cout_pad % c == 0)

    tile_m = _round_up(min(tile_m, _round_up(m, 128)), 128)   # multiple of 128
    m_pad = _round_up(m, tile_m)

    def footprint(tk, with_acc):
        byt = 2 * tile_m * tk * 2          # patches block, double-buffered, bf16
        byt += 2 * tk * tile_n * 2         # weight block (conservative 2x)
        byt += 2 * tile_m * tile_n * 2     # bf16 output block, double-buffered
        if with_acc:
            byt += tile_m * tile_n * 4     # f32 scratch accumulator
        return byt

    # Prefer full-K (no reduction axis, no accumulator); only split K if needed,
    # always keeping k_pad == round_up(k, 128) so there is zero pad waste.
    if footprint(k_pad, False) <= vmem_budget:
        split_k = False
        tile_k = k_pad
    else:
        split_k = True
        tile_k = 128
        for cand in (512, 384, 256, 128):
            if k_pad % cand == 0 and footprint(cand, True) <= vmem_budget:
                tile_k = cand
                break

    need = footprint(tile_k, split_k)
    # Size VMEM limit from the real footprint; cap with headroom under v7x 64 MiB.
    vmem_limit = int(min(max(need * 3 // 2, 16 * 1024 * 1024), 48 * 1024 * 1024))

    patches = jnp.pad(patches, ((0, 0), (0, m_pad - m), (0, k_pad - k)))
    w2d = jnp.pad(w2d, ((0, k_pad - k), (0, cout_pad - cout)))

    # ------------------------------ pallas call --------------------------------
    if not split_k:
        grid = (n, m_pad // tile_m, cout_pad // tile_n)
        kernel = _gemm_relu_kernel
        in_specs = [
            pl.BlockSpec((1, tile_m, k_pad), lambda b, mi, ni: (b, mi, 0)),
            # Constant in (b, mi): weights stay VMEM-resident across all
            # batches / M-tiles (single DMA when there is one Cout tile).
            pl.BlockSpec((k_pad, tile_n), lambda b, mi, ni: (0, ni)),
        ]
        out_spec = pl.BlockSpec((1, tile_m, tile_n),
                                lambda b, mi, ni: (b, mi, ni))
        scratch = []
        dim_sem = ("parallel", "parallel", "parallel")
    else:
        grid = (n, m_pad // tile_m, cout_pad // tile_n, k_pad // tile_k)
        kernel = _gemm_relu_acc_kernel
        in_specs = [
            pl.BlockSpec((1, tile_m, tile_k), lambda b, mi, ni, ki: (b, mi, ki)),
            pl.BlockSpec((tile_k, tile_n), lambda b, mi, ni, ki: (ki, ni)),
        ]
        out_spec = pl.BlockSpec((1, tile_m, tile_n),
                                lambda b, mi, ni, ki: (b, mi, ni))
        scratch = [pltpu.VMEM((tile_m, tile_n), jnp.float32)]
        dim_sem = ("parallel", "parallel", "parallel", "arbitrary")

    out_flat = pl.pallas_call(
        kernel,
        out_shape=jax.ShapeDtypeStruct((n, m_pad, cout_pad), jnp.bfloat16),
        grid_spec=pltpu.PrefetchScalarGridSpec(
            num_scalar_prefetch=0,
            grid=grid,
            in_specs=in_specs,
            out_specs=out_spec,
            scratch_shapes=scratch,
        ),
        compiler_params=pltpu.CompilerParams(
            dimension_semantics=dim_sem,
            vmem_limit_bytes=vmem_limit,
        ),
    )(patches, w2d)

    # Strip padding, restore NCHW; the bf16 -> out_dtype cast fuses into this
    # transpose pass (kernel writes bf16 to halve its HBM writeback).
    out = out_flat[:, :m, :cout].reshape(n, h_out, w_out, cout)
    return jnp.transpose(out, (0, 3, 1, 2)).astype(out_dtype)


if __name__ == "__main__":
    key = jax.random.PRNGKey(0)
    k_x, k_w = jax.random.split(key)

    # BasicConv2d(in_planes=4, out_planes=8, kernel_size=3, stride=1, padding=1)
    N, CIN, H, W = 2, 4, 16, 16
    COUT, KH, KW = 8, 3, 3
    STRIDE, PAD = 1, 1

    x = jax.random.normal(k_x, (N, CIN, H, W), dtype=jnp.float32)
    weight = jax.random.normal(k_w, (COUT, CIN, KH, KW), dtype=jnp.float32) * 0.1

    out = basic_conv2d(x, weight, stride=STRIDE, padding=PAD)
    out = jax.block_until_ready(out)

    # Reference with the same compute recipe (bf16 inputs, f32 accumulation),
    # PyTorch-equivalent conv semantics + ReLU.  Kernel output goes through a
    # bf16 store, so compare at bf16-level tolerance.
    ref = lax.conv_general_dilated(
        x.astype(jnp.bfloat16), weight.astype(jnp.bfloat16),
        window_strides=(STRIDE, STRIDE),
        padding=[(PAD, PAD), (PAD, PAD)],
        dimension_numbers=("NCHW", "OIHW", "NCHW"),
        preferred_element_type=jnp.float32)
    ref = jnp.maximum(ref, 0.0).astype(jnp.float32)

    assert out.shape == (N, COUT, H, W)
    assert jnp.allclose(out, ref, atol=2e-2, rtol=2e-2)

    print("KERNEL_OK")
</pallas_src>

<mosaic_0001>
module attributes {stable_mosaic.version = 11 : i64} {
  func.func @_gemm_relu_kernel(%arg0: i32, %arg1: i32, %arg2: i32, %arg3: memref<1x256x128xbf16, #tpu.memory_space<vmem>>, %arg4: memref<128x128xbf16, #tpu.memory_space<vmem>>, %arg5: memref<1x256x128xbf16, #tpu.memory_space<vmem>>) attributes {dimension_semantics = [#tpu.dimension_semantics<parallel>, #tpu.dimension_semantics<parallel>, #tpu.dimension_semantics<parallel>], iteration_bounds = array<i64: 2, 1, 1>, scalar_prefetch = 0 : i64, scratch_operands = 0 : i64, tpu.core_type = #tpu.core_type<tc>, window_params = [{transform_indices = @transform_0, window_bounds = array<i64: 1, 256, 128>}, {transform_indices = @transform_1, window_bounds = array<i64: 128, 128>}, {transform_indices = @transform_2, window_bounds = array<i64: 1, 256, 128>}]} {
    %c0 = arith.constant 0 : index
    %c0_0 = arith.constant 0 : index
    %c0_1 = arith.constant 0 : index
    %0 = vector.load %arg3[%c0, %c0_0, %c0_1] : memref<1x256x128xbf16, #tpu.memory_space<vmem>>, vector<1x256x128xbf16>
    %1 = vector.shape_cast %0 : vector<1x256x128xbf16> to vector<256x128xbf16>
    %c0_2 = arith.constant 0 : index
    %c0_3 = arith.constant 0 : index
    %2 = vector.load %arg4[%c0_2, %c0_3] : memref<128x128xbf16, #tpu.memory_space<vmem>>, vector<128x128xbf16>
    %cst = arith.constant dense<0.000000e+00> : vector<256x128xf32>
    %3 = tpu.matmul %1, %2, %cst {dimension_numbers = #tpu.dot_dimension_numbers<[1], [0], [0], [1], [0, 0, 1, 1], [], []>} : vector<256x128xbf16>, vector<128x128xbf16>, vector<256x128xf32> -> vector<256x128xf32>
    %cst_4 = arith.constant 0.000000e+00 : f32
    %4 = vector.broadcast %cst_4 : f32 to vector<256x128xf32>
    %5 = arith.maximumf %3, %4 : vector<256x128xf32>
    %6 = arith.truncf %5 : vector<256x128xf32> to vector<256x128xbf16>
    %c0_5 = arith.constant 0 : index
    %c0_6 = arith.constant 0 : index
    %c0_7 = arith.constant 0 : index
    %7 = vector.load %arg5[%c0_5, %c0_6, %c0_7] : memref<1x256x128xbf16, #tpu.memory_space<vmem>>, vector<1x256x128xbf16>
    %8 = vector.shape_cast %7 : vector<1x256x128xbf16> to vector<256x128xbf16>
    %9 = vector.shape_cast %6 : vector<256x128xbf16> to vector<1x256x128xbf16>
    tpu.vector_store %arg5[%c0_5, %c0_6, %c0_7], %9 {strides = array<i32>} : memref<1x256x128xbf16, #tpu.memory_space<vmem>>, vector<1x256x128xbf16>,
    return
  }
  func.func @transform_0(%arg0: i32, %arg1: i32, %arg2: i32) -> (i32, i32, i32) {
    %c0_i32 = arith.constant 0 : i32
    %c0_i32_0 = arith.constant 0 : i32
    return %arg0, %arg1, %c0_i32 : i32, i32, i32
  }
  func.func @transform_1(%arg0: i32, %arg1: i32, %arg2: i32) -> (i32, i32) {
    %c0_i32 = arith.constant 0 : i32
    %c0_i32_0 = arith.constant 0 : i32
    return %c0_i32, %arg2 : i32, i32
  }
  func.func @transform_2(%arg0: i32, %arg1: i32, %arg2: i32) -> (i32, i32, i32) {
    %c0_i32 = arith.constant 0 : i32
    return %arg0, %arg1, %arg2 : i32, i32, i32
  }
}

</mosaic_0001>

<llo_original>
// kernel: tpu_custom_call.1
$region0: #{tpu_custom_call.1}
  #allocation0 [shape = 'u32[]', space=smem, size = 0x4, offset = 0x4, fixed_abs, tag = 'smem constant byte address 0x4 - core index']
  #allocation1 [shape = 'u32[144,128]{1,0:T(1,128)}', space=vmem, size = 0x12000, scoped, tag = 'internal scratch']
  %s0 = inlined_call_operand.hbm [shape: bf16[2,256,128], index: 0, kind: input, shape index: {}]
  %s1 = inlined_call_operand.hbm [shape: bf16[128,128], index: 1, kind: input, shape index: {}]
  %s2 = inlined_call_operand.hbm [shape: bf16[2,256,128], index: 2, kind: output, shape index: {}]
  %s3 = sld [smem:[#allocation0]]
  $region49: #{tpu_custom_call.1} parent=0
    _
  %s5 = ssub.s32 1, %s3
  %s6 = scalar_select 0, %s5, %s3
  $region1: #{tpu_custom_call.1} parent=0
    #allocation2 [shape = 'u8[131072]{0}', space=vmem, size = 0x20000, scoped, tag = 'input window, operand 0']
    #allocation3 [shape = 's32[2]{0}', space=sflag, size = 0x8, scoped, tag = 'scoped memory for tpu_custom_call.1']
    #allocation4 [shape = 's32[2]{0}', space=sflag, size = 0x8, scoped, tag = 'scoped memory for tpu_custom_call.1']
    #allocation5 [shape = 'u8[32768]{0}', space=vmem, size = 0x8000, scoped, tag = 'input window, operand 1, single buffered']
    #allocation6 [shape = 's32[1]{0}', space=sflag, size = 0x4, scoped, tag = 'scoped memory for tpu_custom_call.1']
    #allocation7 [shape = 'u8[131072]{0}', space=vmem, size = 0x20000, scoped, tag = 'output window, operand 0']
    %7 = vsyncpa [#allocation3], 0
    %s8 = scalar_lea.sflag [#allocation3], 1
    %9 = vsyncpa %s8, 0
    %10 = vsyncpa [#allocation6], 0
    %11 = vsyncpa [#allocation4], 0
    %s12 = scalar_lea.sflag [#allocation4], 1
    %13 = vsyncpa %s12, 0
    loop: start=0, step=1, limit=4
    $region2: #{tpu_custom_call.1} parent=1 // loop_pre_header
      _
    $region3: #{tpu_custom_call.1} parent=1 // loop_header
      %s15 = sphi 0, %s19
      %p16 = scmp.ge.s32.totalorder %s15, 4
      %s22 = sphi 0, %s41
      %s23 = sphi 0, %s37
      %s24 = sphi 0, %s33
      %s25 = sphi 0, %s22
      %s26 = sphi 0, %s23
      %s27 = sphi 0, %s24
      %s28 = sphi 0, %s25
      %s29 = sphi 0, %s26
      %s30 = sphi 0, %s27
      %s46 = sphi 0, %s48
      %s49 = sphi 0, %s46
      %s50 = sphi 0, %s49
      %s66 = sphi 0, %s50
      %s72 = sphi 0, %s74
      %s75 = sphi 0, %s72
      %s76 = sphi 0, %s75
      %s92 = sphi 0, %s76
      %s102 = sphi 0, %s104
      %s105 = sphi 0, %s102
      %s106 = sphi 0, %s105
      %s122 = sphi 0, %s106
    $region4: #{tpu_custom_call.1} parent=1 // loop_header_branch
      %18 = sbr.rel (%p16) target = $region8
    $region5: #{tpu_custom_call.1} parent=1 // loop_body
      %s20 = ssub.s32 %s15, 1
      %s21 = ssub.s32 %s15, 2
      %s31 = sadd.s32 1, %s24
      %p32 = scmp.ge.s32.totalorder %s31, 1
      %s33 = scalar_select %p32, 0, %s31
      %s34 = sadd.s32 1, %s23
      %s35 = scalar_select %p32, %s34, %s23
      %p36 = scmp.ge.s32.totalorder %s35, 1
      %s37 = scalar_select %p36, 0, %s35
      %s38 = sadd.s32 1, %s22
      %s39 = scalar_select %p36, %s38, %s22
      %p40 = scmp.ge.s32.totalorder %s39, 2
      %s41 = scalar_select %p40, 0, %s39
      %s42 = ssub.s32 %s22, %s41
      %s43 = ssub.s32 %s23, %s37
      %s44 = sor.u32 %s42, %s43
      %p45 = scmp.eq.s32.totalorder %s44, 0
      %s47 = sadd.s32 %s46, 1
      %s48 = scalar_select %p45, %s46, %s47
      %p51 = pneg %p45
      %p52 = scmp.eq.s32.totalorder %s15, 1
      %p53 = por %p51, %p52
      %p54 = scmp.ne.s32.totalorder %s46, %s49
      %p55 = scmp.eq.s32.totalorder %s15, 0
      %p56 = por %p54, %p55
      %p57 = scmp.ne.s32.totalorder %s46, %s49
      %p58 = scmp.eq.s32.totalorder %s20, 1
      %p59 = por %p57, %p58
      %p60 = scmp.ne.s32.totalorder %s49, %s50
      %p61 = scmp.eq.s32.totalorder %s20, 0
      %p62 = por %p60, %p61
      %p63 = scmp.ne.s32.totalorder %s49, %s50
      %p64 = scmp.eq.s32.totalorder %s21, 1
      %p65 = por %p63, %p64
      %p67 = scmp.ne.s32.totalorder %s50, %s66
      %p68 = scmp.eq.s32.totalorder %s21, 0
      %p69 = por %p67, %p68
      %s70 = ssub.s32 %s24, %s33
      %p71 = scmp.eq.s32.totalorder %s70, 0
      %s73 = sadd.s32 %s72, 1
      %s74 = scalar_select %p71, %s72, %s73
      %p77 = pneg %p71
      %p78 = scmp.eq.s32.totalorder %s15, 1
      %p79 = por %p77, %p78
      %p80 = scmp.ne.s32.totalorder %s72, %s75
      %p81 = scmp.eq.s32.totalorder %s15, 0
      %p82 = por %p80, %p81
      %p83 = scmp.ne.s32.totalorder %s72, %s75
      %p84 = scmp.eq.s32.totalorder %s20, 1
      %p85 = por %p83, %p84
      %p86 = scmp.ne.s32.totalorder %s75, %s76
      %p87 = scmp.eq.s32.totalorder %s20, 0
      %p88 = por %p86, %p87
      %p89 = scmp.ne.s32.totalorder %s75, %s76
      %p90 = scmp.eq.s32.totalorder %s21, 1
      %p91 = por %p89, %p90
      %p93 = scmp.ne.s32.totalorder %s76, %s92
      %p94 = scmp.eq.s32.totalorder %s21, 0
      %p95 = por %p93, %p94
      %s96 = ssub.s32 %s22, %s41
      %s97 = ssub.s32 %s23, %s37
      %s98 = sor.u32 %s96, %s97
      %s99 = ssub.s32 %s24, %s33
      %s100 = sor.u32 %s98, %s99
      %p101 = scmp.eq.s32.totalorder %s100, 0
      %s103 = sadd.s32 %s102, 1
      %s104 = scalar_select %p101, %s102, %s103
      %p107 = pneg %p101
      %p108 = scmp.eq.s32.totalorder %s15, 1
      %p109 = por %p107, %p108
      %p110 = scmp.ne.s32.totalorder %s102, %s105
      %p111 = scmp.eq.s32.totalorder %s15, 0
      %p112 = por %p110, %p111
      %p113 = scmp.ne.s32.totalorder %s102, %s105
      %p114 = scmp.eq.s32.totalorder %s20, 1
      %p115 = por %p113, %p114
      %p116 = scmp.ne.s32.totalorder %s105, %s106
      %p117 = scmp.eq.s32.totalorder %s20, 0
      %p118 = por %p116, %p117
      %p119 = scmp.ne.s32.totalorder %s105, %s106
      %p120 = scmp.eq.s32.totalorder %s21, 1
      %p121 = por %p119, %p120
      %p123 = scmp.ne.s32.totalorder %s106, %s122
      %p124 = scmp.eq.s32.totalorder %s21, 0
      %p125 = por %p123, %p124
      %p126 = scmp.le.s32.totalorder 1, %s15
      %p127 = scmp.lt.s32.totalorder %s15, 3
      %p128 = pnand %p126, %p127
      %p129 = pneg %p128
      // Predicated region
      $region9: #{tpu_custom_call.1} parent=5 // pred_check
        _
      $region10: #{tpu_custom_call.1} parent=5 // pred_check_branch
        %131 = sbr.rel (%p128) target = $region12
      $region11: #{tpu_custom_call.1} parent=5 // pred_region
        %s132 = ssub.s32 %s15, 1
        // Predicated region
        $region13: #{tpu_custom_call.1} parent=11 // pred_check
          %p133 = pneg %p88
        $region14: #{tpu_custom_call.1} parent=11 // pred_check_branch
          %135 = sbr.rel (%p133) target = $region16
        $region15: #{tpu_custom_call.1} parent=11 // pred_region
          %s137 = ssub.s32 1024, 1024
          %138 = vsyncadd [#allocation6], %s137
          %s139 = smul.addr %s27, 64
          %s140 = scalar_lea.hbm %s1, %s139
          %s141 = sshll.u32 [#allocation5], 4
          %s142 = int_to_ptr.vmem [resolvable:$true] %s141
          %147 = dma.hbm_to_vmem [thread:$0]  %s140, 1024, %s142, [#allocation6], 64, 64, 4
        $region16: #{tpu_custom_call.1} parent=11 // pred_fallthru
          _
      $region12: #{tpu_custom_call.1} parent=5 // pred_fallthru
        _
      %p148 = scmp.lt.s32.totalorder %s15, 2
      // Predicated region
      $region17: #{tpu_custom_call.1} parent=5 // pred_check
        %p149 = pneg %p148
      $region18: #{tpu_custom_call.1} parent=5 // pred_check_branch
        %151 = sbr.rel (%p149) target = $region20
      $region19: #{tpu_custom_call.1} parent=5 // pred_region
        // Predicated region
        $region21: #{tpu_custom_call.1} parent=19 // pred_check
          %p152 = pneg %p56
        $region22: #{tpu_custom_call.1} parent=19 // pred_check_branch
          %154 = sbr.rel (%p152) target = $region24
        $region23: #{tpu_custom_call.1} parent=19 // pred_region
          %s155 = sand.u32 %s46, 1
          %s156 = scalar_lea.sflag [#allocation3], %s155
          %s157 = sand.u32 %s46, 1
          %s158 = smul.addr %s157, 128
          %s159 = scalar_lea.vmem [#allocation2], %s158
          %s160 = smul.u32 32, %s23
          %s162 = ssub.s32 2048, 2048
          %163 = vsyncadd %s156, %s162
          %s164 = smul.addr %s22, 32
          %s165 = sadd.s32 %s160, %s164
          %s166 = smul.addr %s165, 64
          %s167 = scalar_lea.hbm %s0, %s166
          %s168 = sshll.u32 %s159, 4
          %s169 = int_to_ptr.vmem [resolvable:$true] %s168
          %174 = dma.hbm_to_vmem [thread:$0]  %s167, 2048, %s169, %s156, 64, 64, 4
        $region24: #{tpu_custom_call.1} parent=19 // pred_fallthru
          _
      $region20: #{tpu_custom_call.1} parent=5 // pred_fallthru
        _
      %p175 = scmp.le.s32.totalorder 1, %s15
      %p176 = scmp.lt.s32.totalorder %s15, 3
      %p177 = pnand %p175, %p176
      %p178 = pneg %p177
      // Predicated region
      $region25: #{tpu_custom_call.1} parent=5 // pred_check
        _
      $region26: #{tpu_custom_call.1} parent=5 // pred_check_branch
        %180 = sbr.rel (%p177) target = $region28
      $region27: #{tpu_custom_call.1} parent=5 // pred_region
        %s181 = ssub.s32 %s15, 1
        %s182 = sand.u32 %s49, 1
        %s183 = scalar_lea.sflag [#allocation3], %s182
        %s184 = sand.u32 %s49, 1
        %s185 = smul.addr %s184, 128
        %s186 = scalar_lea.vmem [#allocation2], %s185
        // Predicated region
        $region29: #{tpu_custom_call.1} parent=27 // pred_check
          %p187 = pneg %p62
        $region30: #{tpu_custom_call.1} parent=27 // pred_check_branch
          %189 = sbr.rel (%p187) target = $region32
        $region31: #{tpu_custom_call.1} parent=27 // pred_region
          %190 = dma.done %s183, 2048
        $region32: #{tpu_custom_call.1} parent=27 // pred_fallthru
          _
        // Predicated region
        $region33: #{tpu_custom_call.1} parent=27 // pred_check
          %p191 = pneg %p88
        $region34: #{tpu_custom_call.1} parent=27 // pred_check_branch
          %193 = sbr.rel (%p191) target = $region36
        $region35: #{tpu_custom_call.1} parent=27 // pred_region
          %194 = dma.done [#allocation6], 1024
        $region36: #{tpu_custom_call.1} parent=27 // pred_fallthru
          _
        %s195 = sand.u32 %s49, 1
        %s196 = scalar_lea.sflag [#allocation3], %s195
        %s197 = sand.u32 %s49, 1
        %s198 = smul.addr %s197, 128
        %s199 = scalar_lea.vmem [#allocation2], %s198
        %p200 = pneg %p62
        %p201 = pneg %p59
        %p202 = pneg %p88
        %p203 = pneg %p85
        %p204 = pneg %p118
        %p205 = pneg %p115
        %s206 = sand.u32 %s105, 1
        %s207 = scalar_lea.sflag [#allocation4], %s206
        %s208 = sand.u32 %s105, 1
        %s209 = smul.addr %s208, 128
        %s210 = scalar_lea.vmem [#allocation7], %s209
        %s211 = smul.u32 32, %s26
        %s212 = smul.u32 32, %s26
        %v214 = vld [vmem:[%s186] sm:$0xf]
        %v215 = vld [vmem:[%s186 + $0x4] sm:$0xf]
        %v216 = vld [vmem:[%s186 + $0x8] sm:$0xf]
        %v217 = vld [vmem:[%s186 + $0xc] sm:$0xf]
        %v218 = vld [vmem:[%s186 + $0x10] sm:$0xf]
        %v219 = vld [vmem:[%s186 + $0x14] sm:$0xf]
        %v220 = vld [vmem:[%s186 + $0x18] sm:$0xf]
        %v221 = vld [vmem:[%s186 + $0x1c] sm:$0xf]
        %v222 = vld [vmem:[%s186 + $0x20] sm:$0xf]
        %v223 = vld [vmem:[%s186 + $0x24] sm:$0xf]
        %v224 = vld [vmem:[%s186 + $0x28] sm:$0xf]
        %v225 = vld [vmem:[%s186 + $0x2c] sm:$0xf]
        %v226 = vld [vmem:[%s186 + $0x30] sm:$0xf]
        %v227 = vld [vmem:[%s186 + $0x34] sm:$0xf]
        %v228 = vld [vmem:[%s186 + $0x38] sm:$0xf]
        %v229 = vld [vmem:[%s186 + $0x3c] sm:$0xf]
        %v230 = vld [vmem:[%s186 + $0x40] sm:$0xf]
        %v231 = vld [vmem:[%s186 + $0x44] sm:$0xf]
        %v232 = vld [vmem:[%s186 + $0x48] sm:$0xf]
        %v233 = vld [vmem:[%s186 + $0x4c] sm:$0xf]
        %v234 = vld [vmem:[%s186 + $0x50] sm:$0xf]
        %v235 = vld [vmem:[%s186 + $0x54] sm:$0xf]
        %v236 = vld [vmem:[%s186 + $0x58] sm:$0xf]
        %v237 = vld [vmem:[%s186 + $0x5c] sm:$0xf]
        %v238 = vld [vmem:[%s186 + $0x60] sm:$0xf]
        %v239 = vld [vmem:[%s186 + $0x64] sm:$0xf]
        %v240 = vld [vmem:[%s186 + $0x68] sm:$0xf]
        %v241 = vld [vmem:[%s186 + $0x6c] sm:$0xf]
        %v242 = vld [vmem:[%s186 + $0x70] sm:$0xf]
        %v243 = vld [vmem:[%s186 + $0x74] sm:$0xf]
        %v244 = vld [vmem:[%s186 + $0x78] sm:$0xf]
        %v245 = vld [vmem:[%s186 + $0x7c] sm:$0xf]
        %v246 = vld [vmem:[#allocation5] sm:$0xf]
        %v247 = vld [vmem:[#allocation5 + $0x4] sm:$0xf]
        %v248 = vld [vmem:[#allocation5 + $0x8] sm:$0xf]
        %v249 = vld [vmem:[#allocation5 + $0xc] sm:$0xf]
        %v250 = vld [vmem:[#allocation5 + $0x10] sm:$0xf]
        %v251 = vld [vmem:[#allocation5 + $0x14] sm:$0xf]
        %v252 = vld [vmem:[#allocation5 + $0x18] sm:$0xf]
        %v253 = vld [vmem:[#allocation5 + $0x1c] sm:$0xf]
        %v254 = vld [vmem:[#allocation5 + $0x20] sm:$0xf]
        %v255 = vld [vmem:[#allocation5 + $0x24] sm:$0xf]
        %v256 = vld [vmem:[#allocation5 + $0x28] sm:$0xf]
        %v257 = vld [vmem:[#allocation5 + $0x2c] sm:$0xf]
        %v258 = vld [vmem:[#allocation5 + $0x30] sm:$0xf]
        %v259 = vld [vmem:[#allocation5 + $0x34] sm:$0xf]
        %v260 = vld [vmem:[#allocation5 + $0x38] sm:$0xf]
        %v261 = vld [vmem:[#allocation5 + $0x3c] sm:$0xf]
        %v294 = vunpack.c.l.b16 %v214
        %v295 = vunpack.c.l.b16 %v215
        %v296 = vunpack.c.l.b16 %v216
        %v297 = vunpack.c.l.b16 %v217
        %v298 = vunpack.c.l.b16 %v218
        %v299 = vunpack.c.l.b16 %v219
        %v300 = vunpack.c.l.b16 %v220
        %v301 = vunpack.c.l.b16 %v221
        %v302 = vunpack.c.l.b16 %v222
        %v303 = vunpack.c.l.b16 %v223
        %v304 = vunpack.c.l.b16 %v224
        %v305 = vunpack.c.l.b16 %v225
        %v306 = vunpack.c.l.b16 %v226
        %v307 = vunpack.c.l.b16 %v227
        %v308 = vunpack.c.l.b16 %v228
        %v309 = vunpack.c.l.b16 %v229
        %v310 = vunpack.c.l.b16 %v230
        %v311 = vunpack.c.l.b16 %v231
        %v312 = vunpack.c.l.b16 %v232
        %v313 = vunpack.c.l.b16 %v233
        %v314 = vunpack.c.l.b16 %v234
        %v315 = vunpack.c.l.b16 %v235
        %v316 = vunpack.c.l.b16 %v236
        %v317 = vunpack.c.l.b16 %v237
        %v318 = vunpack.c.l.b16 %v238
        %v319 = vunpack.c.l.b16 %v239
        %v320 = vunpack.c.l.b16 %v240
        %v321 = vunpack.c.l.b16 %v241
        %v322 = vunpack.c.l.b16 %v242
        %v323 = vunpack.c.l.b16 %v243
        %v324 = vunpack.c.l.b16 %v244
        %v325 = vunpack.c.l.b16 %v245
        %v326 = vpack.c.b16 %v295, %v294
        %v327 = vpack.c.b16 %v297, %v296
        %v328 = vpack.c.b16 %v299, %v298
        %v329 = vpack.c.b16 %v301, %v300
        %v330 = vpack.c.b16 %v303, %v302
        %v331 = vpack.c.b16 %v305, %v304
        %v332 = vpack.c.b16 %v307, %v306
        %v333 = vpack.c.b16 %v309, %v308
        %v334 = vpack.c.b16 %v311, %v310
        %v335 = vpack.c.b16 %v313, %v312
        %v336 = vpack.c.b16 %v315, %v314
        %v337 = vpack.c.b16 %v317, %v316
        %v338 = vpack.c.b16 %v319, %v318
        %v339 = vpack.c.b16 %v321, %v320
        %v340 = vpack.c.b16 %v323, %v322
        %v341 = vpack.c.b16 %v325, %v324
        %v374 = vunpack.c.l.b16 %v246
        %v375 = vunpack.c.l.b16 %v247
        %v376 = vunpack.c.l.b16 %v248
        %v377 = vunpack.c.l.b16 %v249
        %v378 = vunpack.c.l.b16 %v250
        %v379 = vunpack.c.l.b16 %v251
        %v380 = vunpack.c.l.b16 %v252
        %v381 = vunpack.c.l.b16 %v253
        %v382 = vunpack.c.l.b16 %v254
        %v383 = vunpack.c.l.b16 %v255
        %v384 = vunpack.c.l.b16 %v256
        %v385 = vunpack.c.l.b16 %v257
        %v386 = vunpack.c.l.b16 %v258
        %v387 = vunpack.c.l.b16 %v259
        %v388 = vunpack.c.l.b16 %v260
        %v389 = vunpack.c.l.b16 %v261
        %v390 = vpack.c.b16 %v375, %v374
        %v391 = vpack.c.b16 %v377, %v376
        %v392 = vpack.c.b16 %v379, %v378
        %v393 = vpack.c.b16 %v381, %v380
        %v394 = vpack.c.b16 %v383, %v382
        %v395 = vpack.c.b16 %v385, %v384
        %v396 = vpack.c.b16 %v387, %v386
        %v397 = vpack.c.b16 %v389, %v388
        %406 = vmatprep.subr.bf16.mxu0 0
        %407 = vmatpush1.bf16.msra.mxu0 %v397
        %408 = vmatprep.subr.bf16.mxu0 0
        %409 = vmatpush1.bf16.msra.mxu0 %v396
        %410 = vmatprep.subr.bf16.mxu0 0
        %411 = vmatpush1.bf16.msra.mxu0 %v395
        %412 = vmatprep.subr.bf16.mxu0 0
        %413 = vmatpush1.bf16.msra.mxu0 %v394
        %414 = vmatprep.subr.bf16.mxu0 0
        %415 = vmatpush1.bf16.msra.mxu0 %v393
        %416 = vmatprep.subr.bf16.mxu0 0
        %417 = vmatpush1.bf16.msra.mxu0 %v392
        %418 = vmatprep.subr.bf16.mxu0 0
        %419 = vmatpush1.bf16.msra.mxu0 %v391
        %420 = vmatprep.subr.bf16.mxu0 0
        %421 = vmatpush1.bf16.msra.mxu0 %v390
        %422 = vmatprep.subr.bf16.mxu0 0
        %423 = vmatpush2.bf16.msra.mxu0 0
        %424 = vmatprep.subr.bf16.mxu0 0
        %425 = vmatpush2.bf16.msra.mxu0 0
        %426 = vmatprep.subr.bf16.mxu0 0
        %427 = vmatpush2.bf16.msra.mxu0 0
        %428 = vmatprep.subr.bf16.mxu0 0
        %429 = vmatpush2.bf16.msra.mxu0 0
        %430 = vmatprep.subr.bf16.mxu0 0
        %431 = vmatpush2.bf16.msra.mxu0 0
        %432 = vmatprep.subr.bf16.mxu0 0
        %433 = vmatpush2.bf16.msra.mxu0 0
        %434 = vmatprep.subr.bf16.mxu0 0
        %435 = vmatpush2.bf16.msra.mxu0 0
        %436 = vmatprep.subr.bf16.mxu0 0
        %437 = vmatpush2.bf16.msra.mxu0 0
        %438 = vmatprep.mubr.bf16.mxu0 0
        %439 = vmatmul.mubr.bf16.gmra.mxu0 %v326
        %v440 = vpop.f32.mrf.mxu0
        %v441 = vadd.f32 0.0, %v440
        %v442 = vpop.f32.mrf.mxu0
        %v443 = vpop.f32.mrf.mxu0
        %v444 = vadd.f32 0.0, %v443
        %v445 = vpop.f32.mrf.mxu0
        %446 = vmatprep.mubr.bf16.mxu0 0
        %447 = vmatmul.mubr.bf16.gmra.mxu0 %v327
        %v448 = vpop.f32.mrf.mxu0
        %v449 = vadd.f32 0.0, %v448
        %v450 = vpop.f32.mrf.mxu0
        %v451 = vpop.f32.mrf.mxu0
        %v452 = vadd.f32 0.0, %v451
        %v453 = vpop.f32.mrf.mxu0
        %454 = vmatprep.mubr.bf16.mxu0 0
        %455 = vmatmul.mubr.bf16.gmra.mxu0 %v328
        %v456 = vpop.f32.mrf.mxu0
        %v457 = vadd.f32 0.0, %v456
        %v458 = vpop.f32.mrf.mxu0
        %v459 = vpop.f32.mrf.mxu0
        %v460 = vadd.f32 0.0, %v459
        %v461 = vpop.f32.mrf.mxu0
        %462 = vmatprep.mubr.bf16.mxu0 0
        %463 = vmatmul.mubr.bf16.gmra.mxu0 %v329
        %v464 = vpop.f32.mrf.mxu0
        %v465 = vadd.f32 0.0, %v464
        %v466 = vpop.f32.mrf.mxu0
        %v467 = vpop.f32.mrf.mxu0
        %v468 = vadd.f32 0.0, %v467
        %v469 = vpop.f32.mrf.mxu0
        %470 = vmatprep.mubr.bf16.mxu0 0
        %471 = vmatmul.mubr.bf16.gmra.mxu0 %v330
        %v472 = vpop.f32.mrf.mxu0
        %v473 = vadd.f32 0.0, %v472
        %v474 = vpop.f32.mrf.mxu0
        %v475 = vpop.f32.mrf.mxu0
        %v476 = vadd.f32 0.0, %v475
        %v477 = vpop.f32.mrf.mxu0
        %478 = vmatprep.mubr.bf16.mxu0 0
        %479 = vmatmul.mubr.bf16.gmra.mxu0 %v331
        %v480 = vpop.f32.mrf.mxu0
        %v481 = vadd.f32 0.0, %v480
        %v482 = vpop.f32.mrf.mxu0
        %v483 = vpop.f32.mrf.mxu0
        %v484 = vadd.f32 0.0, %v483
        %v485 = vpop.f32.mrf.mxu0
        %486 = vmatprep.mubr.bf16.mxu0 0
        %487 = vmatmul.mubr.bf16.gmra.mxu0 %v332
        %v488 = vpop.f32.mrf.mxu0
        %v489 = vadd.f32 0.0, %v488
        %v490 = vpop.f32.mrf.mxu0
        %v491 = vpop.f32.mrf.mxu0
        %v492 = vadd.f32 0.0, %v491
        %v493 = vpop.f32.mrf.mxu0
        %494 = vmatprep.mubr.bf16.mxu0 0
        %495 = vmatmul.mubr.bf16.gmra.mxu0 %v333
        %v496 = vpop.f32.mrf.mxu0
        %v497 = vadd.f32 0.0, %v496
        %v498 = vpop.f32.mrf.mxu0
        %v499 = vpop.f32.mrf.mxu0
        %v500 = vadd.f32 0.0, %v499
        %v501 = vpop.f32.mrf.mxu0
        %502 = vmatprep.mubr.bf16.mxu0 0
        %503 = vmatmul.mubr.bf16.gmra.mxu0 %v334
        %v504 = vpop.f32.mrf.mxu0
        %v505 = vadd.f32 0.0, %v504
        %v506 = vpop.f32.mrf.mxu0
        %v507 = vpop.f32.mrf.mxu0
        %v508 = vadd.f32 0.0, %v507
        %v509 = vpop.f32.mrf.mxu0
        %510 = vmatprep.mubr.bf16.mxu0 0
        %511 = vmatmul.mubr.bf16.gmra.mxu0 %v335
        %v512 = vpop.f32.mrf.mxu0
        %v513 = vadd.f32 0.0, %v512
        %v514 = vpop.f32.mrf.mxu0
        %v515 = vpop.f32.mrf.mxu0
        %v516 = vadd.f32 0.0, %v515
        %v517 = vpop.f32.mrf.mxu0
        %518 = vmatprep.mubr.bf16.mxu0 0
        %519 = vmatmul.mubr.bf16.gmra.mxu0 %v336
        %v520 = vpop.f32.mrf.mxu0
        %v521 = vadd.f32 0.0, %v520
        %v522 = vpop.f32.mrf.mxu0
        %v523 = vpop.f32.mrf.mxu0
        %v524 = vadd.f32 0.0, %v523
        %v525 = vpop.f32.mrf.mxu0
        %526 = vmatprep.mubr.bf16.mxu0 0
        %527 = vmatmul.mubr.bf16.gmra.mxu0 %v337
        %v528 = vpop.f32.mrf.mxu0
        %v529 = vadd.f32 0.0, %v528
        %v530 = vpop.f32.mrf.mxu0
        %v531 = vpop.f32.mrf.mxu0
        %v532 = vadd.f32 0.0, %v531
        %v533 = vpop.f32.mrf.mxu0
        %534 = vmatprep.mubr.bf16.mxu0 0
        %535 = vmatmul.mubr.bf16.gmra.mxu0 %v338
        %v536 = vpop.f32.mrf.mxu0
        %v537 = vadd.f32 0.0, %v536
        %v538 = vpop.f32.mrf.mxu0
        %v539 = vpop.f32.mrf.mxu0
        %v540 = vadd.f32 0.0, %v539
        %v541 = vpop.f32.mrf.mxu0
        %542 = vmatprep.mubr.bf16.mxu0 0
        %543 = vmatmul.mubr.bf16.gmra.mxu0 %v339
        %v544 = vpop.f32.mrf.mxu0
        %v545 = vadd.f32 0.0, %v544
        %v546 = vpop.f32.mrf.mxu0
        %v547 = vpop.f32.mrf.mxu0
        %v548 = vadd.f32 0.0, %v547
        %v549 = vpop.f32.mrf.mxu0
        %550 = vmatprep.mubr.bf16.mxu0 0
        %551 = vmatmul.mubr.bf16.gmra.mxu0 %v340
        %v552 = vpop.f32.mrf.mxu0
        %v553 = vadd.f32 0.0, %v552
        %v554 = vpop.f32.mrf.mxu0
        %v555 = vpop.f32.mrf.mxu0
        %v556 = vadd.f32 0.0, %v555
        %v557 = vpop.f32.mrf.mxu0
        %558 = vmatprep.mubr.bf16.mxu0 0
        %559 = vmatmul.mubr.bf16.gmra.mxu0 %v341
        %v560 = vpop.f32.mrf.mxu0
        %v561 = vadd.f32 0.0, %v560
        %v562 = vpop.f32.mrf.mxu0
        %v563 = vpop.f32.mrf.mxu0
        %v564 = vadd.f32 0.0, %v563
        %v565 = vpop.f32.mrf.mxu0
        %566 = vdwg.mxu0
        %v567 = vmax.f32 %v441, 0.0
        %v568 = vmax.f32 %v444, 0.0
        %v569 = vmax.f32 %v449, 0.0
        %v570 = vmax.f32 %v452, 0.0
        %v571 = vmax.f32 %v457, 0.0
        %v572 = vmax.f32 %v460, 0.0
        %v573 = vmax.f32 %v465, 0.0
        %v574 = vmax.f32 %v468, 0.0
        %v575 = vmax.f32 %v473, 0.0
        %v576 = vmax.f32 %v476, 0.0
        %v577 = vmax.f32 %v481, 0.0
        %v578 = vmax.f32 %v484, 0.0
        %v579 = vmax.f32 %v489, 0.0
        %v580 = vmax.f32 %v492, 0.0
        %v581 = vmax.f32 %v497, 0.0
        %v582 = vmax.f32 %v500, 0.0
        %v583 = vmax.f32 %v505, 0.0
        %v584 = vmax.f32 %v508, 0.0
        %v585 = vmax.f32 %v513, 0.0
        %v586 = vmax.f32 %v516, 0.0
        %v587 = vmax.f32 %v521, 0.0
        %v588 = vmax.f32 %v524, 0.0
        %v589 = vmax.f32 %v529, 0.0
        %v590 = vmax.f32 %v532, 0.0
        %v591 = vmax.f32 %v537, 0.0
        %v592 = vmax.f32 %v540, 0.0
        %v593 = vmax.f32 %v545, 0.0
        %v594 = vmax.f32 %v548, 0.0
        %v595 = vmax.f32 %v553, 0.0
        %v596 = vmax.f32 %v556, 0.0
        %v597 = vmax.f32 %v561, 0.0
        %v598 = vmax.f32 %v564, 0.0
        %v599 = vpack.c.bf16 %v568, %v567
        %v600 = vpack.c.bf16 %v570, %v569
        %v601 = vpack.c.bf16 %v572, %v571
        %v602 = vpack.c.bf16 %v574, %v573
        %v603 = vpack.c.bf16 %v576, %v575
        %v604 = vpack.c.bf16 %v578, %v577
        %v605 = vpack.c.bf16 %v580, %v579
        %v606 = vpack.c.bf16 %v582, %v581
        %v607 = vpack.c.bf16 %v584, %v583
        %v608 = vpack.c.bf16 %v586, %v585
        %v609 = vpack.c.bf16 %v588, %v587
        %v610 = vpack.c.bf16 %v590, %v589
        %v611 = vpack.c.bf16 %v592, %v591
        %v612 = vpack.c.bf16 %v594, %v593
        %v613 = vpack.c.bf16 %v596, %v595
        %v614 = vpack.c.bf16 %v598, %v597
        %v631 = vunpack.c.l.b16 %v599
        %v632 = vunpack.c.h.b16 %v599
        %v633 = vunpack.c.l.b16 %v600
        %v634 = vunpack.c.h.b16 %v600
        %v635 = vunpack.c.l.b16 %v601
        %v636 = vunpack.c.h.b16 %v601
        %v637 = vunpack.c.l.b16 %v602
        %v638 = vunpack.c.h.b16 %v602
        %v639 = vunpack.c.l.b16 %v603
        %v640 = vunpack.c.h.b16 %v603
        %v641 = vunpack.c.l.b16 %v604
        %v642 = vunpack.c.h.b16 %v604
        %v643 = vunpack.c.l.b16 %v605
        %v644 = vunpack.c.h.b16 %v605
        %v645 = vunpack.c.l.b16 %v606
        %v646 = vunpack.c.h.b16 %v606
        %v647 = vunpack.c.l.b16 %v607
        %v648 = vunpack.c.h.b16 %v607
        %v649 = vunpack.c.l.b16 %v608
        %v650 = vunpack.c.h.b16 %v608
        %v651 = vunpack.c.l.b16 %v609
        %v652 = vunpack.c.h.b16 %v609
        %v653 = vunpack.c.l.b16 %v610
        %v654 = vunpack.c.h.b16 %v610
        %v655 = vunpack.c.l.b16 %v611
        %v656 = vunpack.c.h.b16 %v611
        %v657 = vunpack.c.l.b16 %v612
        %v658 = vunpack.c.h.b16 %v612
        %v659 = vunpack.c.l.b16 %v613
        %v660 = vunpack.c.h.b16 %v613
        %v661 = vunpack.c.l.b16 %v614
        %v662 = vunpack.c.h.b16 %v614
        %v663 = vpack.c.b16 %v631, %v631
        %v664 = vpack.c.b16 %v632, %v632
        %v665 = vpack.c.b16 %v633, %v633
        %v666 = vpack.c.b16 %v634, %v634
        %v667 = vpack.c.b16 %v635, %v635
        %v668 = vpack.c.b16 %v636, %v636
        %v669 = vpack.c.b16 %v637, %v637
        %v670 = vpack.c.b16 %v638, %v638
        %v671 = vpack.c.b16 %v639, %v639
        %v672 = vpack.c.b16 %v640, %v640
        %v673 = vpack.c.b16 %v641, %v641
        %v674 = vpack.c.b16 %v642, %v642
        %v675 = vpack.c.b16 %v643, %v643
        %v676 = vpack.c.b16 %v644, %v644
        %v677 = vpack.c.b16 %v645, %v645
        %v678 = vpack.c.b16 %v646, %v646
        %v679 = vpack.c.b16 %v647, %v647
        %v680 = vpack.c.b16 %v648, %v648
        %v681 = vpack.c.b16 %v649, %v649
        %v682 = vpack.c.b16 %v650, %v650
        %v683 = vpack.c.b16 %v651, %v651
        %v684 = vpack.c.b16 %v652, %v652
        %v685 = vpack.c.b16 %v653, %v653
        %v686 = vpack.c.b16 %v654, %v654
        %v687 = vpack.c.b16 %v655, %v655
        %v688 = vpack.c.b16 %v656, %v656
        %v689 = vpack.c.b16 %v657, %v657
        %v690 = vpack.c.b16 %v658, %v658
        %v691 = vpack.c.b16 %v659, %v659
        %v692 = vpack.c.b16 %v660, %v660
        %v693 = vpack.c.b16 %v661, %v661
        %v694 = vpack.c.b16 %v662, %v662
        %727 = vst [vmem:[%s210] sm:$0xf] %v663
        %728 = vst [vmem:[%s210 + $0x4] sm:$0xf] %v664
        %729 = vst [vmem:[%s210 + $0x8] sm:$0xf] %v665
        %730 = vst [vmem:[%s210 + $0xc] sm:$0xf] %v666
        %731 = vst [vmem:[%s210 + $0x10] sm:$0xf] %v667
        %732 = vst [vmem:[%s210 + $0x14] sm:$0xf] %v668
        %733 = vst [vmem:[%s210 + $0x18] sm:$0xf] %v669
        %734 = vst [vmem:[%s210 + $0x1c] sm:$0xf] %v670
        %735 = vst [vmem:[%s210 + $0x20] sm:$0xf] %v671
        %736 = vst [vmem:[%s210 + $0x24] sm:$0xf] %v672
        %737 = vst [vmem:[%s210 + $0x28] sm:$0xf] %v673
        %738 = vst [vmem:[%s210 + $0x2c] sm:$0xf] %v674
        %739 = vst [vmem:[%s210 + $0x30] sm:$0xf] %v675
        %740 = vst [vmem:[%s210 + $0x34] sm:$0xf] %v676
        %741 = vst [vmem:[%s210 + $0x38] sm:$0xf] %v677
        %742 = vst [vmem:[%s210 + $0x3c] sm:$0xf] %v678
        %743 = vst [vmem:[%s210 + $0x40] sm:$0xf] %v679
        %744 = vst [vmem:[%s210 + $0x44] sm:$0xf] %v680
        %745 = vst [vmem:[%s210 + $0x48] sm:$0xf] %v681
        %746 = vst [vmem:[%s210 + $0x4c] sm:$0xf] %v682
        %747 = vst [vmem:[%s210 + $0x50] sm:$0xf] %v683
        %748 = vst [vmem:[%s210 + $0x54] sm:$0xf] %v684
        %749 = vst [vmem:[%s210 + $0x58] sm:$0xf] %v685
        %750 = vst [vmem:[%s210 + $0x5c] sm:$0xf] %v686
        %751 = vst [vmem:[%s210 + $0x60] sm:$0xf] %v687
        %752 = vst [vmem:[%s210 + $0x64] sm:$0xf] %v688
        %753 = vst [vmem:[%s210 + $0x68] sm:$0xf] %v689
        %754 = vst [vmem:[%s210 + $0x6c] sm:$0xf] %v690
        %755 = vst [vmem:[%s210 + $0x70] sm:$0xf] %v691
        %756 = vst [vmem:[%s210 + $0x74] sm:$0xf] %v692
        %757 = vst [vmem:[%s210 + $0x78] sm:$0xf] %v693
        %758 = vst [vmem:[%s210 + $0x7c] sm:$0xf] %v694
        %s759 = sand.u32 %s105, 1
        %s760 = scalar_lea.sflag [#allocation4], %s759
        %s761 = sand.u32 %s105, 1
        %s762 = smul.addr %s761, 128
        %s763 = scalar_lea.vmem [#allocation7], %s762
        // Predicated region
        $region37: #{tpu_custom_call.1} parent=27 // pred_check
          %p764 = pneg %p115
        $region38: #{tpu_custom_call.1} parent=27 // pred_check_branch
          %766 = sbr.rel (%p764) target = $region40
        $region39: #{tpu_custom_call.1} parent=27 // pred_region
          %s767 = smul.u32 32, %s26
          %s769 = ssub.s32 2048, 2048
          %770 = vsyncadd %s760, %s769
          %s771 = sadd.s32 %s27, %s767
          %s772 = smul.addr %s25, 32
          %s773 = sadd.s32 %s771, %s772
          %s774 = smul.addr %s773, 64
          %s775 = scalar_lea.hbm %s2, %s774
          %s776 = sshll.u32 %s763, 4
          %s777 = int_to_ptr.vmem [resolvable:$true] %s776
          %782 = dma.vmem_to_hbm [thread:$0]  %s777, 2048, %s775, %s760, 64, 64, 4
        $region40: #{tpu_custom_call.1} parent=27 // pred_fallthru
          _
      $region28: #{tpu_custom_call.1} parent=5 // pred_fallthru
        _
      %p783 = scmp.le.s32.totalorder 2, %s15
      // Predicated region
      $region41: #{tpu_custom_call.1} parent=5 // pred_check
        %p784 = pneg %p783
      $region42: #{tpu_custom_call.1} parent=5 // pred_check_branch
        %786 = sbr.rel (%p784) target = $region44
      $region43: #{tpu_custom_call.1} parent=5 // pred_region
        %s787 = ssub.s32 %s15, 2
        // Predicated region
        $region45: #{tpu_custom_call.1} parent=43 // pred_check
          %p788 = pneg %p121
        $region46: #{tpu_custom_call.1} parent=43 // pred_check_branch
          %790 = sbr.rel (%p788) target = $region48
        $region47: #{tpu_custom_call.1} parent=43 // pred_region
          %s791 = sand.u32 %s106, 1
          %s792 = scalar_lea.sflag [#allocation4], %s791
          %s793 = sand.u32 %s106, 1
          %s794 = smul.addr %s793, 128
          %s795 = scalar_lea.vmem [#allocation7], %s794
          %796 = dma.done %s792, 2048
        $region48: #{tpu_custom_call.1} parent=43 // pred_fallthru
          _
      $region44: #{tpu_custom_call.1} parent=5 // pred_fallthru
        _
    $region6: #{tpu_custom_call.1} parent=1 // loop_footer
      %s19 = sadd.s32 1, %s15
    $region7: #{tpu_custom_call.1} parent=1 // loop_footer_branch
      %14 = sbr.rel target = $region3
    $region8: #{tpu_custom_call.1} parent=1 // loop_exit
      _
    %797 = vsyncpa [#allocation3], 1
    %s798 = scalar_lea.sflag [#allocation3], 1
    %799 = vsyncpa %s798, 1
    %800 = vsyncpa [#allocation6], 1
    %801 = vsyncpa [#allocation4], 1
    %s802 = scalar_lea.sflag [#allocation4], 1
    %803 = vsyncpa %s802, 1

</llo_original>
